<compile_context>
chip_gen: v5e
topology: v5e:2x2
jax: 0.10.0
libtpu: 0.0.40
codegen_flags: <defaults>
</compile_context>

<pallas_src>
import jax
import jax.numpy as jnp
from jax.experimental import pallas as pl
from jax.experimental.pallas import tpu as pltpu


def _round_up(x: int, m: int) -> int:
    return ((x + m - 1) // m) * m


# ----------------------------------------------------------------------------
# Fused MLP-trunk kernel: all Linear layers (+ inline ReLU) in one kernel.
#   x_ref: [TB, F]    zero-padded activations (F = common 128-aligned width)
#   w_ref: [L, F, F]  stacked zero-padded weights (in x out)
#   b_ref: [L, F]     stacked zero-padded biases
# Zero padding is self-consistent: padded feature columns get bias 0 ->
# ReLU(0) = 0 activations, which then meet zero-padded weight rows downstream,
# so the unpadded slice of the output equals the unpadded math exactly.
# ----------------------------------------------------------------------------
def _policy_trunk_kernel(x_ref, w_ref, b_ref, o_ref):
    num_layers = w_ref.shape[0]
    x = x_ref[...]                                    # [TB, F] f32, stays in VMEM
    for layer in range(num_layers):                   # static unroll
        w = w_ref[layer]                              # [F, F]
        b = b_ref[layer:layer + 1, :]                 # [1, F]
        x = jnp.dot(x, w, preferred_element_type=jnp.float32) + b
        if layer != num_layers - 1:
            x = jnp.maximum(x, 0.0)                   # ReLU, f32 VPU path
    o_ref[...] = x.astype(o_ref.dtype)                # lane-dense 128-wide store


_BATCH_TILE = 256  # rows per grid step when the batch is large (multiple of 8)


def policy_forward(params, obs):
    """Forward pass of Policy.trunk as ONE fused Pallas kernel."""
    B, obs_dim = obs.shape
    action_dim = params[-1][0].shape[1]
    num_layers = len(params)

    # Common lane-aligned feature width shared by every layer.
    feat = _round_up(max([obs_dim] + [w.shape[1] for w, _ in params]), 128)

    # Pack + zero-pad all weights / biases into single VMEM slabs
    # (one DMA each instead of N tiny (1, Out) operands).
    w_stack = jnp.zeros((num_layers, feat, feat), jnp.float32)
    b_stack = jnp.zeros((num_layers, feat), jnp.float32)
    for layer, (w, b) in enumerate(params):
        fi, fo = w.shape
        w_stack = w_stack.at[layer, :fi, :fo].set(w.astype(jnp.float32))
        b_stack = b_stack.at[layer, :fo].set(b.astype(jnp.float32))

    if B <= _BATCH_TILE:
        # Small batch: no grid at all -> no pipeline prologue/epilogue, no
        # double buffering; every operand is a full-array VMEM resident.
        b_pad = _round_up(B, 8)
        x_p = jnp.zeros((b_pad, feat), jnp.float32).at[:B, :obs_dim].set(obs)
        out_p = pl.pallas_call(
            _policy_trunk_kernel,
            out_shape=jax.ShapeDtypeStruct((b_pad, feat), jnp.float32),
            in_specs=[
                pl.BlockSpec(memory_space=pltpu.MemorySpace.VMEM),
                pl.BlockSpec(memory_space=pltpu.MemorySpace.VMEM),
                pl.BlockSpec(memory_space=pltpu.MemorySpace.VMEM),
            ],
            out_specs=pl.BlockSpec(memory_space=pltpu.MemorySpace.VMEM),
        )(x_p, w_stack, b_stack)
    else:
        # Large batch (rollout / serving): tile the batch axis; mark it
        # "parallel" so it shards across TensorCores on megacore parts (v7x).
        b_pad = _round_up(B, _BATCH_TILE)
        x_p = jnp.zeros((b_pad, feat), jnp.float32).at[:B, :obs_dim].set(obs)
        out_p = pl.pallas_call(
            _policy_trunk_kernel,
            out_shape=jax.ShapeDtypeStruct((b_pad, feat), jnp.float32),
            grid=(b_pad // _BATCH_TILE,),
            in_specs=[
                pl.BlockSpec((_BATCH_TILE, feat), lambda i: (i, 0)),
                pl.BlockSpec((num_layers, feat, feat), lambda i: (0, 0, 0)),
                pl.BlockSpec((num_layers, feat), lambda i: (0, 0)),
            ],
            out_specs=pl.BlockSpec((_BATCH_TILE, feat), lambda i: (i, 0)),
            compiler_params=pltpu.CompilerParams(
                dimension_semantics=("parallel",)),
        )(x_p, w_stack, b_stack)

    return out_p[:B, :action_dim]


# ----------------------------------------------------------------------------
# Policy: JAX equivalent of the PyTorch module (MLP trunk).
#   hidden_depth == 0 : single Linear(obs_dim -> action_dim)
#   hidden_depth >= 1 : Linear+ReLU, (hidden_depth-1) x [Linear+ReLU], Linear
# TODO(synk): do_regularization=True (BatchNorm1d) and output_mod are not
#             implemented; the reference defaults (False / None) are covered.
# ----------------------------------------------------------------------------
def init_policy_params(key, obs_dim, action_dim, hidden_dim, hidden_depth):
    """PyTorch-style uniform(+-1/sqrt(fan_in)) init, weights stored [in, out]."""
    if hidden_depth == 0:
        dims = [(obs_dim, action_dim)]
    else:
        dims = [(obs_dim, hidden_dim)]
        dims += [(hidden_dim, hidden_dim)] * (hidden_depth - 1)
        dims += [(hidden_dim, action_dim)]

    params = []
    for fan_in, fan_out in dims:
        key, kw, kb = jax.random.split(key, 3)
        bound = 1.0 / jnp.sqrt(float(fan_in))
        w = jax.random.uniform(kw, (fan_in, fan_out), jnp.float32, -bound, bound)
        b = jax.random.uniform(kb, (fan_out,), jnp.float32, -bound, bound)
        params.append((w, b))
    return params


def policy_forward_ref(params, obs):
    """Plain-JAX reference for correctness checking."""
    x = obs
    for idx, (w, b) in enumerate(params):
        x = x @ w + b
        if idx != len(params) - 1:
            x = jnp.maximum(x, 0.0)
    return x


if __name__ == "__main__":
    # Small shapes consistent with Policy(obs_dim, action_dim, hidden_dim, depth)
    B = 8
    obs_dim = 16
    action_dim = 8
    hidden_dim = 32
    hidden_depth = 2

    key = jax.random.PRNGKey(0)
    key, k_obs = jax.random.split(key)
    obs = jax.random.normal(k_obs, (B, obs_dim), dtype=jnp.float32)
    params = init_policy_params(key, obs_dim, action_dim, hidden_dim, hidden_depth)

    forward = jax.jit(policy_forward)

    # Small-batch (gridless, fully fused) path.
    out = jax.block_until_ready(forward(params, obs))
    ref = policy_forward_ref(params, obs)
    assert out.shape == (B, action_dim)
    assert jnp.allclose(out, ref, atol=1e-5, rtol=1e-5), "mismatch (small batch)"

    # Also exercise the batched grid ("parallel") path once — still tiny data.
    B_big = 2 * _BATCH_TILE
    obs_big = jax.random.normal(jax.random.PRNGKey(1), (B_big, obs_dim), jnp.float32)
    out_big = jax.block_until_ready(forward(params, obs_big))
    ref_big = policy_forward_ref(params, obs_big)
    assert out_big.shape == (B_big, action_dim)
    assert jnp.allclose(out_big, ref_big, atol=1e-5, rtol=1e-5), "mismatch (batched)"

    print("KERNEL_OK")
</pallas_src>

<mosaic_0001>
module attributes {stable_mosaic.version = 11 : i64} {
  func.func @_policy_trunk_kernel(%arg0: memref<8x128xf32, #tpu.memory_space<vmem>>, %arg1: memref<3x128x128xf32, #tpu.memory_space<vmem>>, %arg2: memref<3x128xf32, #tpu.memory_space<vmem>>, %arg3: memref<8x128xf32, #tpu.memory_space<vmem>>) attributes {dimension_semantics = [], scalar_prefetch = 0 : i64, scratch_operands = 0 : i64, tpu.core_type = #tpu.core_type<tc>} {
    %c0 = arith.constant 0 : index
    %c0_0 = arith.constant 0 : index
    %0 = vector.load %arg0[%c0, %c0_0] : memref<8x128xf32, #tpu.memory_space<vmem>>, vector<8x128xf32>
    %c0_1 = arith.constant 0 : index
    %c0_2 = arith.constant 0 : index
    %c0_3 = arith.constant 0 : index
    %1 = vector.load %arg1[%c0_1, %c0_2, %c0_3] : memref<3x128x128xf32, #tpu.memory_space<vmem>>, vector<1x128x128xf32>
    %2 = vector.shape_cast %1 : vector<1x128x128xf32> to vector<128x128xf32>
    %c0_4 = arith.constant 0 : index
    %c0_5 = arith.constant 0 : index
    %3 = vector.load %arg2[%c0_4, %c0_5] : memref<3x128xf32, #tpu.memory_space<vmem>>, vector<1x128xf32>
    %cst = arith.constant dense<0.000000e+00> : vector<8x128xf32>
    %4 = tpu.matmul %0, %2, %cst {dimension_numbers = #tpu.dot_dimension_numbers<[1], [0], [0], [1], [0, 0, 1, 1], [], []>} : vector<8x128xf32>, vector<128x128xf32>, vector<8x128xf32> -> vector<8x128xf32>
    %5 = vector.broadcast %3 : vector<1x128xf32> to vector<8x128xf32>
    %6 = arith.addf %4, %5 : vector<8x128xf32>
    %cst_6 = arith.constant 0.000000e+00 : f32
    %7 = vector.broadcast %cst_6 : f32 to vector<8x128xf32>
    %8 = arith.maximumf %6, %7 : vector<8x128xf32>
    %c1 = arith.constant 1 : index
    %c0_7 = arith.constant 0 : index
    %c0_8 = arith.constant 0 : index
    %9 = vector.load %arg1[%c1, %c0_7, %c0_8] : memref<3x128x128xf32, #tpu.memory_space<vmem>>, vector<1x128x128xf32>
    %10 = vector.shape_cast %9 : vector<1x128x128xf32> to vector<128x128xf32>
    %c1_9 = arith.constant 1 : index
    %c0_10 = arith.constant 0 : index
    %11 = vector.load %arg2[%c1_9, %c0_10] : memref<3x128xf32, #tpu.memory_space<vmem>>, vector<1x128xf32>
    %cst_11 = arith.constant dense<0.000000e+00> : vector<8x128xf32>
    %12 = tpu.matmul %8, %10, %cst_11 {dimension_numbers = #tpu.dot_dimension_numbers<[1], [0], [0], [1], [0, 0, 1, 1], [], []>} : vector<8x128xf32>, vector<128x128xf32>, vector<8x128xf32> -> vector<8x128xf32>
    %13 = vector.broadcast %11 : vector<1x128xf32> to vector<8x128xf32>
    %14 = arith.addf %12, %13 : vector<8x128xf32>
    %cst_12 = arith.constant 0.000000e+00 : f32
    %15 = vector.broadcast %cst_12 : f32 to vector<8x128xf32>
    %16 = arith.maximumf %14, %15 : vector<8x128xf32>
    %c2 = arith.constant 2 : index
    %c0_13 = arith.constant 0 : index
    %c0_14 = arith.constant 0 : index
    %17 = vector.load %arg1[%c2, %c0_13, %c0_14] : memref<3x128x128xf32, #tpu.memory_space<vmem>>, vector<1x128x128xf32>
    %18 = vector.shape_cast %17 : vector<1x128x128xf32> to vector<128x128xf32>
    %c2_15 = arith.constant 2 : index
    %c0_16 = arith.constant 0 : index
    %19 = vector.load %arg2[%c2_15, %c0_16] : memref<3x128xf32, #tpu.memory_space<vmem>>, vector<1x128xf32>
    %cst_17 = arith.constant dense<0.000000e+00> : vector<8x128xf32>
    %20 = tpu.matmul %16, %18, %cst_17 {dimension_numbers = #tpu.dot_dimension_numbers<[1], [0], [0], [1], [0, 0, 1, 1], [], []>} : vector<8x128xf32>, vector<128x128xf32>, vector<8x128xf32> -> vector<8x128xf32>
    %21 = vector.broadcast %19 : vector<1x128xf32> to vector<8x128xf32>
    %22 = arith.addf %20, %21 : vector<8x128xf32>
    %c0_18 = arith.constant 0 : index
    %c0_19 = arith.constant 0 : index
    %23 = vector.load %arg3[%c0_18, %c0_19] : memref<8x128xf32, #tpu.memory_space<vmem>>, vector<8x128xf32>
    tpu.vector_store %arg3[%c0_18, %c0_19], %22 {strides = array<i32>} : memref<8x128xf32, #tpu.memory_space<vmem>>, vector<8x128xf32>,
    return
  }
}

</mosaic_0001>

<llo_original>
// kernel: policy_forward.1
$region0: #{policy_forward.1}
  #allocation0 [shape = 'u32[]', space=smem, size = 0x4, offset = 0x4, fixed_abs, tag = 'smem constant byte address 0x4 - core index']
  #allocation1 [shape = 'u32[72,128]{1,0:T(1,128)}', space=vmem, size = 0x9000, scoped, tag = 'internal scratch']
  %s0 = inlined_call_operand.vmem [shape: f32[8,128], index: 0, kind: input, shape index: {}]
  %s1 = inlined_call_operand.vmem [shape: f32[3,128,128], index: 1, kind: input, shape index: {}]
  %s2 = inlined_call_operand.vmem [shape: f32[3,128], index: 2, kind: input, shape index: {}]
  %s3 = inlined_call_operand.hbm [shape: f32[8,128], index: 3, kind: output, shape index: {}]
  %s4 = sld [smem:[#allocation0]]
  $region22: #{policy_forward.1} parent=0
    _
  %s6 = ssub.s32 1, %s4
  %s7 = scalar_select 0, %s6, %s4
  $region1: #{policy_forward.1} parent=0
    #allocation2 [shape = 'u8[4096]{0}', space=vmem, size = 0x1000, scoped, tag = 'output window, operand 0, single buffered']
    #allocation3 [shape = 's32[1]{0}', space=sflag, size = 0x4, scoped, tag = 'scoped memory for policy_forward.1']
    %8 = vsyncpa [#allocation3], 0
    // Predicated region
    $region2: #{policy_forward.1} parent=1 // pred_check
      _
    $region3: #{policy_forward.1} parent=1 // pred_check_branch
      %10 = sbr.rel (0) target = $region5
    $region4: #{policy_forward.1} parent=1 // pred_region
      _
    $region5: #{policy_forward.1} parent=1 // pred_fallthru
      _
    // Predicated region
    $region6: #{policy_forward.1} parent=1 // pred_check
      _
    $region7: #{policy_forward.1} parent=1 // pred_check_branch
      %12 = sbr.rel (0) target = $region9
    $region8: #{policy_forward.1} parent=1 // pred_region
      _
    $region9: #{policy_forward.1} parent=1 // pred_fallthru
      _
    // Predicated region
    $region10: #{policy_forward.1} parent=1 // pred_check
      _
    $region11: #{policy_forward.1} parent=1 // pred_check_branch
      %14 = sbr.rel (0) target = $region13
    $region12: #{policy_forward.1} parent=1 // pred_region
      _
    $region13: #{policy_forward.1} parent=1 // pred_fallthru
      _
    %v15 = vld [vmem:[%s0] sm:$0xff]
    %v16 = vld [vmem:[%s1] sm:$0xff]
    %v17 = vld [vmem:[%s1 + $0x8] sm:$0xff]
    %v18 = vld [vmem:[%s1 + $0x10] sm:$0xff]
    %v19 = vld [vmem:[%s1 + $0x18] sm:$0xff]
    %v20 = vld [vmem:[%s1 + $0x20] sm:$0xff]
    %v21 = vld [vmem:[%s1 + $0x28] sm:$0xff]
    %v22 = vld [vmem:[%s1 + $0x30] sm:$0xff]
    %v23 = vld [vmem:[%s1 + $0x38] sm:$0xff]
    %v24 = vld [vmem:[%s1 + $0x40] sm:$0xff]
    %v25 = vld [vmem:[%s1 + $0x48] sm:$0xff]
    %v26 = vld [vmem:[%s1 + $0x50] sm:$0xff]
    %v27 = vld [vmem:[%s1 + $0x58] sm:$0xff]
    %v28 = vld [vmem:[%s1 + $0x60] sm:$0xff]
    %v29 = vld [vmem:[%s1 + $0x68] sm:$0xff]
    %v30 = vld [vmem:[%s1 + $0x70] sm:$0xff]
    %v31 = vld [vmem:[%s1 + $0x78] sm:$0xff]
    %v32 = vld [vmem:[%s2] sm:$0x1]
    %v33 = vperm.slane %v32, 0
    %34 = vmatpush.msra.mxu0 %v31
    %35 = vmatpush.msra.mxu0 %v30
    %36 = vmatpush.msra.mxu0 %v29
    %37 = vmatpush.msra.mxu0 %v28
    %38 = vmatpush.msra.mxu0 %v27
    %39 = vmatpush.msra.mxu0 %v26
    %40 = vmatpush.msra.mxu0 %v25
    %41 = vmatpush.msra.mxu0 %v24
    %42 = vmatpush.msra.mxu0 %v23
    %43 = vmatpush.msra.mxu0 %v22
    %44 = vmatpush.msra.mxu0 %v21
    %45 = vmatpush.msra.mxu0 %v20
    %46 = vmatpush.msra.mxu0 %v19
    %47 = vmatpush.msra.mxu0 %v18
    %48 = vmatpush.msra.mxu0 %v17
    %49 = vmatpush.msra.mxu0 %v16
    %50 = vmatmul.f32.gmra.mxu0 %v15
    %v51 = vpop.f32.mrf.mxu0
    %v52 = vadd.f32 %v33, %v51
    %53 = vdwg.mxu0
    %v54 = vmax.f32 %v52, 0.0
    %s55 = scalar_lea.vmem %s1, 128
    %v56 = vld [vmem:[%s55] sm:$0xff]
    %v57 = vld [vmem:[%s55 + $0x8] sm:$0xff]
    %v58 = vld [vmem:[%s55 + $0x10] sm:$0xff]
    %v59 = vld [vmem:[%s55 + $0x18] sm:$0xff]
    %v60 = vld [vmem:[%s55 + $0x20] sm:$0xff]
    %v61 = vld [vmem:[%s55 + $0x28] sm:$0xff]
    %v62 = vld [vmem:[%s55 + $0x30] sm:$0xff]
    %v63 = vld [vmem:[%s55 + $0x38] sm:$0xff]
    %v64 = vld [vmem:[%s55 + $0x40] sm:$0xff]
    %v65 = vld [vmem:[%s55 + $0x48] sm:$0xff]
    %v66 = vld [vmem:[%s55 + $0x50] sm:$0xff]
    %v67 = vld [vmem:[%s55 + $0x58] sm:$0xff]
    %v68 = vld [vmem:[%s55 + $0x60] sm:$0xff]
    %v69 = vld [vmem:[%s55 + $0x68] sm:$0xff]
    %v70 = vld [vmem:[%s55 + $0x70] sm:$0xff]
    %v71 = vld [vmem:[%s55 + $0x78] sm:$0xff]
    %v72 = vld [vmem:[%s2 + $0x1] sm:$0x1]
    %v73 = vperm.slane %v72, 0
    %74 = vmatpush.msra.mxu0 %v71
    %75 = vmatpush.msra.mxu0 %v70
    %76 = vmatpush.msra.mxu0 %v69
    %77 = vmatpush.msra.mxu0 %v68
    %78 = vmatpush.msra.mxu0 %v67
    %79 = vmatpush.msra.mxu0 %v66
    %80 = vmatpush.msra.mxu0 %v65
    %81 = vmatpush.msra.mxu0 %v64
    %82 = vmatpush.msra.mxu0 %v63
    %83 = vmatpush.msra.mxu0 %v62
    %84 = vmatpush.msra.mxu0 %v61
    %85 = vmatpush.msra.mxu0 %v60
    %86 = vmatpush.msra.mxu0 %v59
    %87 = vmatpush.msra.mxu0 %v58
    %88 = vmatpush.msra.mxu0 %v57
    %89 = vmatpush.msra.mxu0 %v56
    %90 = vmatmul.f32.gmra.mxu0 %v54
    %v91 = vpop.f32.mrf.mxu0
    %v92 = vadd.f32 %v73, %v91
    %93 = vdwg.mxu0
    %v94 = vmax.f32 %v92, 0.0
    %s95 = scalar_lea.vmem %s1, 256
    %v96 = vld [vmem:[%s95] sm:$0xff]
    %v97 = vld [vmem:[%s95 + $0x8] sm:$0xff]
    %v98 = vld [vmem:[%s95 + $0x10] sm:$0xff]
    %v99 = vld [vmem:[%s95 + $0x18] sm:$0xff]
    %v100 = vld [vmem:[%s95 + $0x20] sm:$0xff]
    %v101 = vld [vmem:[%s95 + $0x28] sm:$0xff]
    %v102 = vld [vmem:[%s95 + $0x30] sm:$0xff]
    %v103 = vld [vmem:[%s95 + $0x38] sm:$0xff]
    %v104 = vld [vmem:[%s95 + $0x40] sm:$0xff]
    %v105 = vld [vmem:[%s95 + $0x48] sm:$0xff]
    %v106 = vld [vmem:[%s95 + $0x50] sm:$0xff]
    %v107 = vld [vmem:[%s95 + $0x58] sm:$0xff]
    %v108 = vld [vmem:[%s95 + $0x60] sm:$0xff]
    %v109 = vld [vmem:[%s95 + $0x68] sm:$0xff]
    %v110 = vld [vmem:[%s95 + $0x70] sm:$0xff]
    %v111 = vld [vmem:[%s95 + $0x78] sm:$0xff]
    %v112 = vld [vmem:[%s2 + $0x2] sm:$0x1]
    %v113 = vperm.slane %v112, 0
    %114 = vmatpush.msra.mxu0 %v111
    %115 = vmatpush.msra.mxu0 %v110
    %116 = vmatpush.msra.mxu0 %v109
    %117 = vmatpush.msra.mxu0 %v108
    %118 = vmatpush.msra.mxu0 %v107
    %119 = vmatpush.msra.mxu0 %v106
    %120 = vmatpush.msra.mxu0 %v105
    %121 = vmatpush.msra.mxu0 %v104
    %122 = vmatpush.msra.mxu0 %v103
    %123 = vmatpush.msra.mxu0 %v102
    %124 = vmatpush.msra.mxu0 %v101
    %125 = vmatpush.msra.mxu0 %v100
    %126 = vmatpush.msra.mxu0 %v99
    %127 = vmatpush.msra.mxu0 %v98
    %128 = vmatpush.msra.mxu0 %v97
    %129 = vmatpush.msra.mxu0 %v96
    %130 = vmatmul.f32.gmra.mxu0 %v94
    %v131 = vpop.f32.mrf.mxu0
    %v132 = vadd.f32 %v113, %v131
    %133 = vdwg.mxu0
    %134 = vst [vmem:[#allocation2] sm:$0xff] %v132
    // Predicated region
    $region14: #{policy_forward.1} parent=1 // pred_check
      _
    $region15: #{policy_forward.1} parent=1 // pred_check_branch
      %136 = sbr.rel (0) target = $region17
    $region16: #{policy_forward.1} parent=1 // pred_region
      %138 = vsyncadd [#allocation3], 0
      %s140 = sshll.u32 [#allocation2], 4
      %s141 = int_to_ptr.vmem [resolvable:$true] %s140
      %s142 = sshll.u32 %s3, 4
      %s143 = int_to_ptr.hbm [resolvable:$true] %s142
      %145 = dma.vmem_to_hbm [thread:$0]  %s141, 128, %s143, [#allocation3]
    $region17: #{policy_forward.1} parent=1 // pred_fallthru
      _
    // Predicated region
    $region18: #{policy_forward.1} parent=1 // pred_check
      _
    $region19: #{policy_forward.1} parent=1 // pred_check_branch
      %147 = sbr.rel (0) target = $region21
    $region20: #{policy_forward.1} parent=1 // pred_region
      %149 = dma.done [#allocation3], 128
    $region21: #{policy_forward.1} parent=1 // pred_fallthru
      _
    %150 = vsyncpa [#allocation3], 1

</llo_original>
